<compile_context>
chip_gen: v7x
topology: tpu7x:2x2x1
jax: 0.10.0
libtpu: 0.0.40
codegen_flags: <defaults>
</compile_context>

<pallas_src>
import functools
import math

import jax
import jax.numpy as jnp
import numpy as np
from jax.experimental import pallas as pl
from jax.experimental.pallas import tpu as pltpu


def fld_attention_kernel(q_ref, k_ref, v_ref, m_ref,
                         wq_ref, bq_ref, wk_ref, bk_ref, wo_ref, bo_ref,
                         out_ref, *, num_heads, head_dim, in_dim):
    Bb, Lq, E = q_ref.shape
    _, Lk, _ = k_ref.shape
    D = in_dim
    scale = 1.0 / math.sqrt(head_dim)

    # ---- tall Q/K projections: fold batch*seq into the MXU M dimension ----
    q2 = q_ref[...].reshape(Bb * Lq, E)                      # (Bb*Lq, E)
    k2 = k_ref[...].reshape(Bb * Lk, E)                      # (Bb*Lk, E)
    qp = jnp.dot(q2, wq_ref[...], preferred_element_type=jnp.float32) + bq_ref[...]
    kp = jnp.dot(k2, wk_ref[...], preferred_element_type=jnp.float32) + bk_ref[...]
    qp = qp * scale                                          # fold 1/sqrt(dk) once
    qp3 = qp.reshape(Bb, Lq, E)
    kp3 = kp.reshape(Bb, Lk, E)

    # ---- fused numerator/denominator RHS, built once outside the head loop ----
    mk = (m_ref[...] != 0).astype(jnp.float32)               # (Bb, Lk, D)
    v = v_ref[...].astype(jnp.float32)                       # (Bb, Lk, D)
    mvk = jnp.concatenate([mk * v, mk], axis=-1)             # (Bb, Lk, 2D)

    head_outs = []
    for h in range(num_heads):                               # static, tiny head count
        qh = qp3[:, :, h * head_dim:(h + 1) * head_dim]      # (Bb, Lq, dk)
        kh = kp3[:, :, h * head_dim:(h + 1) * head_dim]      # (Bb, Lk, dk)
        s = jnp.einsum('bqd,bkd->bqk', qh, kh,
                       preferred_element_type=jnp.float32)   # (Bb, Lq, Lk)
        e = jnp.exp(s - jnp.max(s, axis=-1, keepdims=True))  # stable exp (EUP)
        nd = jnp.einsum('bqk,bkd->bqd', e, mvk,
                        preferred_element_type=jnp.float32)  # (Bb, Lq, 2D)
        num = nd[:, :, :D]
        den = nd[:, :, D:]
        head_outs.append(num * pl.reciprocal(den, approx=False))

    # head-major concat (matches torch transpose(1,2).view) -> single tall
    # output projection on the MXU.
    x = jnp.concatenate(head_outs, axis=-1).reshape(Bb * Lq, num_heads * D)
    out = jnp.dot(x, wo_ref[...], preferred_element_type=jnp.float32) + bo_ref[...]
    out_ref[...] = out.astype(out_ref.dtype)


def fld_attention(query, key, value, params, mask=None, num_heads=2,
                  batch_block=None):
    """Pallas implementation of FLDAttention.forward (shared_out=True)."""
    B, Lq, E = query.shape
    _, Lk, D = value.shape
    assert E % num_heads == 0
    dk = E // num_heads
    wq, bq, wk, bk, wo, bo = params
    latent = wo.shape[-1]
    if mask is None:
        mask = jnp.ones((B, Lk, D), value.dtype)

    # Default: the whole batch in ONE grid step (problem is a few KB).
    # On v7x, pass batch_block=B//2 to spread work over both TensorCores.
    if batch_block is None:
        batch_block = B
    assert B % batch_block == 0
    nb = B // batch_block

    kernel = functools.partial(fld_attention_kernel,
                               num_heads=num_heads, head_dim=dk, in_dim=D)

    def act_spec(L, F):
        return pl.BlockSpec((batch_block, L, F), lambda i: (i, 0, 0))

    def w_spec(shape):
        return pl.BlockSpec(shape, lambda i: (0,) * len(shape))

    out_flat = pl.pallas_call(
        kernel,
        out_shape=jax.ShapeDtypeStruct((B * Lq, latent), jnp.float32),
        grid=(nb,),
        in_specs=[
            act_spec(Lq, E),                 # query
            act_spec(Lk, E),                 # key
            act_spec(Lk, D),                 # value
            act_spec(Lk, D),                 # mask
            w_spec((E, E)),                  # Wq
            w_spec((1, E)),                  # bq
            w_spec((E, E)),                  # Wk
            w_spec((1, E)),                  # bk
            w_spec((num_heads * D, latent)), # Wout
            w_spec((1, latent)),             # bout
        ],
        out_specs=pl.BlockSpec((batch_block * Lq, latent), lambda i: (i, 0)),
        compiler_params=pltpu.CompilerParams(dimension_semantics=("parallel",)),
    )(query, key, value, mask,
      wq, bq.reshape(1, E), wk, bk.reshape(1, E), wo, bo.reshape(1, latent))
    return out_flat.reshape(B, Lq, latent)


def fld_attention_ref(query, key, value, params, mask=None, num_heads=2):
    """Pure-JAX transcription of the PyTorch forward for verification."""
    wq, bq, wk, bk, wo, bo = params
    B, Lq, E = query.shape
    _, Lk, D = value.shape
    dk = E // num_heads
    q = query @ wq + bq
    k = key @ wk + bk
    q = q.reshape(B, Lq, num_heads, dk).transpose(0, 2, 1, 3)
    k = k.reshape(B, Lk, num_heads, dk).transpose(0, 2, 1, 3)
    scores = jnp.einsum('bhqe,bhke->bhqk', q, k) / math.sqrt(dk)
    scores = jnp.broadcast_to(scores[..., None], (B, num_heads, Lq, Lk, D))
    if mask is not None:
        m = mask[:, None, None, :, :]
        scores = jnp.where(m == 0, -1e9, scores)
    p = jax.nn.softmax(scores, axis=-2)
    x = jnp.sum(p * value[:, None, None, :, :], axis=-2)   # (B,H,Lq,D)
    x = x.transpose(0, 2, 1, 3).reshape(B, Lq, num_heads * D)
    return x @ wo + bo


if __name__ == "__main__":
    B, Lq, Lk = 2, 8, 8
    D = 4            # input_dim (value feature dim)
    E = 16           # embed_dim
    H = 2            # num_heads
    LATENT = 16      # latent_dim

    root = jax.random.PRNGKey(0)
    ks = jax.random.split(root, 10)
    query = jax.random.normal(ks[0], (B, Lq, E), jnp.float32)
    key_in = jax.random.normal(ks[1], (B, Lk, E), jnp.float32)
    value = jax.random.normal(ks[2], (B, Lk, D), jnp.float32)
    mask = (jax.random.uniform(ks[3], (B, Lk, D)) > 0.2).astype(jnp.float32)
    mask = mask.at[:, 0, :].set(1.0)   # keep at least one key unmasked per feature

    # deterministic synthetic parameters (shapes from the module __init__)
    wq = jax.random.normal(ks[4], (E, E), jnp.float32) / math.sqrt(E)
    bq = jax.random.normal(ks[5], (E,), jnp.float32) * 0.1
    wk = jax.random.normal(ks[6], (E, E), jnp.float32) / math.sqrt(E)
    bk = jax.random.normal(ks[7], (E,), jnp.float32) * 0.1
    wo = jax.random.normal(ks[8], (H * D, LATENT), jnp.float32) / math.sqrt(H * D)
    bo = jax.random.normal(ks[9], (LATENT,), jnp.float32) * 0.1
    params = (wq, bq, wk, bk, wo, bo)

    out = fld_attention(query, key_in, value, params, mask=mask, num_heads=H)
    jax.block_until_ready(out)
    assert out.shape == (B, Lq, LATENT)

    ref = fld_attention_ref(query, key_in, value, params, mask=mask, num_heads=H)
    np.testing.assert_allclose(np.asarray(out), np.asarray(ref),
                               rtol=1e-4, atol=1e-4)
    print("KERNEL_OK")
</pallas_src>

<mosaic_0001>
module attributes {stable_mosaic.version = 11 : i64} {
  func.func @fld_attention_kernel(%arg0: i32, %arg1: memref<2x8x16xf32, #tpu.memory_space<vmem>>, %arg2: memref<2x8x16xf32, #tpu.memory_space<vmem>>, %arg3: memref<2x8x4xf32, #tpu.memory_space<vmem>>, %arg4: memref<2x8x4xf32, #tpu.memory_space<vmem>>, %arg5: memref<16x16xf32, #tpu.memory_space<vmem>>, %arg6: memref<1x16xf32, #tpu.memory_space<vmem>>, %arg7: memref<16x16xf32, #tpu.memory_space<vmem>>, %arg8: memref<1x16xf32, #tpu.memory_space<vmem>>, %arg9: memref<8x16xf32, #tpu.memory_space<vmem>>, %arg10: memref<1x16xf32, #tpu.memory_space<vmem>>, %arg11: memref<16x16xf32, #tpu.memory_space<vmem>>) attributes {dimension_semantics = [#tpu.dimension_semantics<parallel>], iteration_bounds = array<i64: 1>, scalar_prefetch = 0 : i64, scratch_operands = 0 : i64, tpu.core_type = #tpu.core_type<tc>, window_params = [{transform_indices = @transform_0, window_bounds = array<i64: 2, 8, 16>}, {transform_indices = @transform_1, window_bounds = array<i64: 2, 8, 16>}, {transform_indices = @transform_2, window_bounds = array<i64: 2, 8, 4>}, {transform_indices = @transform_3, window_bounds = array<i64: 2, 8, 4>}, {pipeline_mode = #tpu.pipeline_mode<synchronous>, transform_indices = @transform_4, window_bounds = array<i64: 16, 16>}, {pipeline_mode = #tpu.pipeline_mode<synchronous>, transform_indices = @transform_5, window_bounds = array<i64: 1, 16>}, {pipeline_mode = #tpu.pipeline_mode<synchronous>, transform_indices = @transform_6, window_bounds = array<i64: 16, 16>}, {pipeline_mode = #tpu.pipeline_mode<synchronous>, transform_indices = @transform_7, window_bounds = array<i64: 1, 16>}, {pipeline_mode = #tpu.pipeline_mode<synchronous>, transform_indices = @transform_8, window_bounds = array<i64: 8, 16>}, {pipeline_mode = #tpu.pipeline_mode<synchronous>, transform_indices = @transform_9, window_bounds = array<i64: 1, 16>}, {transform_indices = @transform_10, window_bounds = array<i64: 16, 16>}]} {
    %c0 = arith.constant 0 : index
    %c0_0 = arith.constant 0 : index
    %c0_1 = arith.constant 0 : index
    %0 = vector.load %arg1[%c0, %c0_0, %c0_1] : memref<2x8x16xf32, #tpu.memory_space<vmem>>, vector<2x8x16xf32>
    %1 = vector.shape_cast %0 : vector<2x8x16xf32> to vector<16x16xf32>
    %c0_2 = arith.constant 0 : index
    %c0_3 = arith.constant 0 : index
    %c0_4 = arith.constant 0 : index
    %2 = vector.load %arg2[%c0_2, %c0_3, %c0_4] : memref<2x8x16xf32, #tpu.memory_space<vmem>>, vector<2x8x16xf32>
    %3 = vector.shape_cast %2 : vector<2x8x16xf32> to vector<16x16xf32>
    %c0_5 = arith.constant 0 : index
    %c0_6 = arith.constant 0 : index
    %4 = vector.load %arg5[%c0_5, %c0_6] : memref<16x16xf32, #tpu.memory_space<vmem>>, vector<16x16xf32>
    %cst = arith.constant dense<0.000000e+00> : vector<16x16xf32>
    %5 = tpu.matmul %1, %4, %cst {dimension_numbers = #tpu.dot_dimension_numbers<[1], [0], [0], [1], [0, 0, 1, 1], [], []>} : vector<16x16xf32>, vector<16x16xf32>, vector<16x16xf32> -> vector<16x16xf32>
    %c0_7 = arith.constant 0 : index
    %c0_8 = arith.constant 0 : index
    %6 = vector.load %arg6[%c0_7, %c0_8] : memref<1x16xf32, #tpu.memory_space<vmem>>, vector<1x16xf32>
    %7 = vector.broadcast %6 : vector<1x16xf32> to vector<16x16xf32>
    %8 = arith.addf %5, %7 : vector<16x16xf32>
    %c0_9 = arith.constant 0 : index
    %c0_10 = arith.constant 0 : index
    %9 = vector.load %arg7[%c0_9, %c0_10] : memref<16x16xf32, #tpu.memory_space<vmem>>, vector<16x16xf32>
    %cst_11 = arith.constant dense<0.000000e+00> : vector<16x16xf32>
    %10 = tpu.matmul %3, %9, %cst_11 {dimension_numbers = #tpu.dot_dimension_numbers<[1], [0], [0], [1], [0, 0, 1, 1], [], []>} : vector<16x16xf32>, vector<16x16xf32>, vector<16x16xf32> -> vector<16x16xf32>
    %c0_12 = arith.constant 0 : index
    %c0_13 = arith.constant 0 : index
    %11 = vector.load %arg8[%c0_12, %c0_13] : memref<1x16xf32, #tpu.memory_space<vmem>>, vector<1x16xf32>
    %12 = vector.broadcast %11 : vector<1x16xf32> to vector<16x16xf32>
    %13 = arith.addf %10, %12 : vector<16x16xf32>
    %cst_14 = arith.constant 0.353553385 : f32
    %14 = vector.broadcast %cst_14 : f32 to vector<16x16xf32>
    %15 = arith.mulf %8, %14 : vector<16x16xf32>
    %16 = vector.shape_cast %15 : vector<16x16xf32> to vector<2x8x16xf32>
    %17 = vector.shape_cast %13 : vector<16x16xf32> to vector<2x8x16xf32>
    %c0_15 = arith.constant 0 : index
    %c0_16 = arith.constant 0 : index
    %c0_17 = arith.constant 0 : index
    %18 = vector.load %arg4[%c0_15, %c0_16, %c0_17] : memref<2x8x4xf32, #tpu.memory_space<vmem>>, vector<2x8x4xf32>
    %cst_18 = arith.constant 0.000000e+00 : f32
    %19 = vector.broadcast %cst_18 : f32 to vector<2x8x4xf32>
    %20 = arith.cmpf one, %18, %19 : vector<2x8x4xf32>
    %21 = arith.extui %20 : vector<2x8x4xi1> to vector<2x8x4xi32>
    %22 = arith.sitofp %21 : vector<2x8x4xi32> to vector<2x8x4xf32>
    %c0_19 = arith.constant 0 : index
    %c0_20 = arith.constant 0 : index
    %c0_21 = arith.constant 0 : index
    %23 = vector.load %arg3[%c0_19, %c0_20, %c0_21] : memref<2x8x4xf32, #tpu.memory_space<vmem>>, vector<2x8x4xf32>
    %24 = arith.mulf %22, %23 : vector<2x8x4xf32>
    %25 = tpu.concatenate %24, %22 in 2 : vector<2x8x4xf32>, vector<2x8x4xf32> -> vector<2x8x8xf32>
    %26 = vector.extract_strided_slice %16 {offsets = [0, 0, 0], sizes = [2, 8, 8], strides = [1, 1, 1]} : vector<2x8x16xf32> to vector<2x8x8xf32>
    %27 = vector.extract_strided_slice %17 {offsets = [0, 0, 0], sizes = [2, 8, 8], strides = [1, 1, 1]} : vector<2x8x16xf32> to vector<2x8x8xf32>
    "tpu.trace_start"() <{level = 10 : i32, message = "bqd,bkd->bqk"}> : () -> ()
    %cst_22 = arith.constant dense<0.000000e+00> : vector<2x8x8xf32>
    %28 = tpu.matmul %26, %27, %cst_22 {dimension_numbers = #tpu.dot_dimension_numbers<[2], [2], [1], [1], [0, 0, 0, 1, 1, 1], [0], [0]>} : vector<2x8x8xf32>, vector<2x8x8xf32>, vector<2x8x8xf32> -> vector<2x8x8xf32>
    "tpu.trace_stop"() : () -> ()
    %cst_23 = arith.constant dense<0xFF800000> : vector<2x8xf32>
    %29 = vector.multi_reduction <maximumf>, %28, %cst_23 [2] : vector<2x8x8xf32> to vector<2x8xf32>
    %30 = vector.shape_cast %29 : vector<2x8xf32> to vector<2x8x1xf32>
    %31 = vector.broadcast %30 : vector<2x8x1xf32> to vector<2x8x8xf32>
    %32 = arith.subf %28, %31 : vector<2x8x8xf32>
    %33 = math.exp %32 : vector<2x8x8xf32>
    "tpu.trace_start"() <{level = 10 : i32, message = "bqk,bkd->bqd"}> : () -> ()
    %cst_24 = arith.constant dense<0.000000e+00> : vector<2x8x8xf32>
    %34 = tpu.matmul %33, %25, %cst_24 {dimension_numbers = #tpu.dot_dimension_numbers<[2], [1], [1], [2], [0, 0, 0, 1, 1, 2], [0], [0]>} : vector<2x8x8xf32>, vector<2x8x8xf32>, vector<2x8x8xf32> -> vector<2x8x8xf32>
    "tpu.trace_stop"() : () -> ()
    %35 = vector.extract_strided_slice %34 {offsets = [0, 0, 0], sizes = [2, 8, 4], strides = [1, 1, 1]} : vector<2x8x8xf32> to vector<2x8x4xf32>
    %36 = vector.extract_strided_slice %34 {offsets = [0, 0, 4], sizes = [2, 8, 4], strides = [1, 1, 1]} : vector<2x8x8xf32> to vector<2x8x4xf32>
    %37 = tpu.reciprocal %36 : vector<2x8x4xf32> -> vector<2x8x4xf32>
    %38 = arith.mulf %35, %37 : vector<2x8x4xf32>
    %39 = vector.extract_strided_slice %16 {offsets = [0, 0, 8], sizes = [2, 8, 8], strides = [1, 1, 1]} : vector<2x8x16xf32> to vector<2x8x8xf32>
    %40 = vector.extract_strided_slice %17 {offsets = [0, 0, 8], sizes = [2, 8, 8], strides = [1, 1, 1]} : vector<2x8x16xf32> to vector<2x8x8xf32>
    "tpu.trace_start"() <{level = 10 : i32, message = "bqd,bkd->bqk"}> : () -> ()
    %cst_25 = arith.constant dense<0.000000e+00> : vector<2x8x8xf32>
    %41 = tpu.matmul %39, %40, %cst_25 {dimension_numbers = #tpu.dot_dimension_numbers<[2], [2], [1], [1], [0, 0, 0, 1, 1, 1], [0], [0]>} : vector<2x8x8xf32>, vector<2x8x8xf32>, vector<2x8x8xf32> -> vector<2x8x8xf32>
    "tpu.trace_stop"() : () -> ()
    %cst_26 = arith.constant dense<0xFF800000> : vector<2x8xf32>
    %42 = vector.multi_reduction <maximumf>, %41, %cst_26 [2] : vector<2x8x8xf32> to vector<2x8xf32>
    %43 = vector.shape_cast %42 : vector<2x8xf32> to vector<2x8x1xf32>
    %44 = vector.broadcast %43 : vector<2x8x1xf32> to vector<2x8x8xf32>
    %45 = arith.subf %41, %44 : vector<2x8x8xf32>
    %46 = math.exp %45 : vector<2x8x8xf32>
    "tpu.trace_start"() <{level = 10 : i32, message = "bqk,bkd->bqd"}> : () -> ()
    %cst_27 = arith.constant dense<0.000000e+00> : vector<2x8x8xf32>
    %47 = tpu.matmul %46, %25, %cst_27 {dimension_numbers = #tpu.dot_dimension_numbers<[2], [1], [1], [2], [0, 0, 0, 1, 1, 2], [0], [0]>} : vector<2x8x8xf32>, vector<2x8x8xf32>, vector<2x8x8xf32> -> vector<2x8x8xf32>
    "tpu.trace_stop"() : () -> ()
    %48 = vector.extract_strided_slice %47 {offsets = [0, 0, 0], sizes = [2, 8, 4], strides = [1, 1, 1]} : vector<2x8x8xf32> to vector<2x8x4xf32>
    %49 = vector.extract_strided_slice %47 {offsets = [0, 0, 4], sizes = [2, 8, 4], strides = [1, 1, 1]} : vector<2x8x8xf32> to vector<2x8x4xf32>
    %50 = tpu.reciprocal %49 : vector<2x8x4xf32> -> vector<2x8x4xf32>
    %51 = arith.mulf %48, %50 : vector<2x8x4xf32>
    %52 = tpu.concatenate %38, %51 in 2 : vector<2x8x4xf32>, vector<2x8x4xf32> -> vector<2x8x8xf32>
    %53 = vector.shape_cast %52 : vector<2x8x8xf32> to vector<16x8xf32>
    %c0_28 = arith.constant 0 : index
    %c0_29 = arith.constant 0 : index
    %54 = vector.load %arg9[%c0_28, %c0_29] : memref<8x16xf32, #tpu.memory_space<vmem>>, vector<8x16xf32>
    %cst_30 = arith.constant dense<0.000000e+00> : vector<16x16xf32>
    %55 = tpu.matmul %53, %54, %cst_30 {dimension_numbers = #tpu.dot_dimension_numbers<[1], [0], [0], [1], [0, 0, 1, 1], [], []>} : vector<16x8xf32>, vector<8x16xf32>, vector<16x16xf32> -> vector<16x16xf32>
    %c0_31 = arith.constant 0 : index
    %c0_32 = arith.constant 0 : index
    %56 = vector.load %arg10[%c0_31, %c0_32] : memref<1x16xf32, #tpu.memory_space<vmem>>, vector<1x16xf32>
    %57 = vector.broadcast %56 : vector<1x16xf32> to vector<16x16xf32>
    %58 = arith.addf %55, %57 : vector<16x16xf32>
    %c0_33 = arith.constant 0 : index
    %c0_34 = arith.constant 0 : index
    %59 = vector.load %arg11[%c0_33, %c0_34] : memref<16x16xf32, #tpu.memory_space<vmem>>, vector<16x16xf32>
    tpu.vector_store %arg11[%c0_33, %c0_34], %58 {strides = array<i32>} : memref<16x16xf32, #tpu.memory_space<vmem>>, vector<16x16xf32>,
    return
  }
  func.func @transform_0(%arg0: i32) -> (i32, i32, i32) {
    %c0_i32 = arith.constant 0 : i32
    %c0_i32_0 = arith.constant 0 : i32
    %c0_i32_1 = arith.constant 0 : i32
    return %arg0, %c0_i32, %c0_i32_0 : i32, i32, i32
  }
  func.func @transform_1(%arg0: i32) -> (i32, i32, i32) {
    %c0_i32 = arith.constant 0 : i32
    %c0_i32_0 = arith.constant 0 : i32
    %c0_i32_1 = arith.constant 0 : i32
    return %arg0, %c0_i32, %c0_i32_0 : i32, i32, i32
  }
  func.func @transform_2(%arg0: i32) -> (i32, i32, i32) {
    %c0_i32 = arith.constant 0 : i32
    %c0_i32_0 = arith.constant 0 : i32
    %c0_i32_1 = arith.constant 0 : i32
    return %arg0, %c0_i32, %c0_i32_0 : i32, i32, i32
  }
  func.func @transform_3(%arg0: i32) -> (i32, i32, i32) {
    %c0_i32 = arith.constant 0 : i32
    %c0_i32_0 = arith.constant 0 : i32
    %c0_i32_1 = arith.constant 0 : i32
    return %arg0, %c0_i32, %c0_i32_0 : i32, i32, i32
  }
  func.func @transform_4(%arg0: i32) -> (i32, i32) {
    %c0_i32 = arith.constant 0 : i32
    %c0_i32_0 = arith.constant 0 : i32
    %c0_i32_1 = arith.constant 0 : i32
    return %c0_i32, %c0_i32_0 : i32, i32
  }
  func.func @transform_5(%arg0: i32) -> (i32, i32) {
    %c0_i32 = arith.constant 0 : i32
    %c0_i32_0 = arith.constant 0 : i32
    %c0_i32_1 = arith.constant 0 : i32
    return %c0_i32, %c0_i32_0 : i32, i32
  }
  func.func @transform_6(%arg0: i32) -> (i32, i32) {
    %c0_i32 = arith.constant 0 : i32
    %c0_i32_0 = arith.constant 0 : i32
    %c0_i32_1 = arith.constant 0 : i32
    return %c0_i32, %c0_i32_0 : i32, i32
  }
  func.func @transform_7(%arg0: i32) -> (i32, i32) {
    %c0_i32 = arith.constant 0 : i32
    %c0_i32_0 = arith.constant 0 : i32
    %c0_i32_1 = arith.constant 0 : i32
    return %c0_i32, %c0_i32_0 : i32, i32
  }
  func.func @transform_8(%arg0: i32) -> (i32, i32) {
    %c0_i32 = arith.constant 0 : i32
    %c0_i32_0 = arith.constant 0 : i32
    %c0_i32_1 = arith.constant 0 : i32
    return %c0_i32, %c0_i32_0 : i32, i32
  }
  func.func @transform_9(%arg0: i32) -> (i32, i32) {
    %c0_i32 = arith.constant 0 : i32
    %c0_i32_0 = arith.constant 0 : i32
    %c0_i32_1 = arith.constant 0 : i32
    return %c0_i32, %c0_i32_0 : i32, i32
  }
  func.func @transform_10(%arg0: i32) -> (i32, i32) {
    %c0_i32 = arith.constant 0 : i32
    %c0_i32_0 = arith.constant 0 : i32
    return %arg0, %c0_i32 : i32, i32
  }
}

</mosaic_0001>

<llo_original>
// kernel: tpu_custom_call.1
$region0: #{tpu_custom_call.1}
  #allocation0 [shape = 'u32[]', space=smem, size = 0x4, offset = 0x4, fixed_abs, tag = 'smem constant byte address 0x4 - core index']
  #allocation1 [shape = 'u32[144,128]{1,0:T(1,128)}', space=vmem, size = 0x12000, scoped, tag = 'internal scratch']
  %s0 = inlined_call_operand.vmem [shape: f32[2,8,16], index: 0, kind: input, shape index: {}]
  %s1 = inlined_call_operand.vmem [shape: f32[2,8,16], index: 1, kind: input, shape index: {}]
  %s2 = inlined_call_operand.vmem [shape: f32[2,8,4], index: 2, kind: input, shape index: {}]
  %s3 = inlined_call_operand.vmem [shape: f32[2,8,4], index: 3, kind: input, shape index: {}]
  %s4 = inlined_call_operand.vmem [shape: f32[16,16], index: 4, kind: input, shape index: {}]
  %s5 = inlined_call_operand.vmem [shape: f32[1,16], index: 5, kind: input, shape index: {}]
  %s6 = inlined_call_operand.vmem [shape: f32[16,16], index: 6, kind: input, shape index: {}]
  %s7 = inlined_call_operand.vmem [shape: f32[1,16], index: 7, kind: input, shape index: {}]
  %s8 = inlined_call_operand.vmem [shape: f32[8,16], index: 8, kind: input, shape index: {}]
  %s9 = inlined_call_operand.vmem [shape: f32[1,16], index: 9, kind: input, shape index: {}]
  %s10 = inlined_call_operand.hbm [shape: f32[16,16], index: 10, kind: output, shape index: {}]
  %s11 = sld [smem:[#allocation0]]
  $region50: #{tpu_custom_call.1} parent=0
    _
  %s13 = ssub.s32 1, %s11
  %s14 = scalar_select 0, %s13, %s11
  $region1: #{tpu_custom_call.1} parent=0
    #allocation2 [shape = 'u8[8192]{0}', space=vmem, size = 0x2000, scoped, tag = 'output window, operand 0, single buffered']
    #allocation3 [shape = 's32[1]{0}', space=sflag, size = 0x4, scoped, tag = 'scoped memory for tpu_custom_call.1']
    %15 = vsyncpa [#allocation3], 0
    // Predicated region
    $region2: #{tpu_custom_call.1} parent=1 // pred_check
      _
    $region3: #{tpu_custom_call.1} parent=1 // pred_check_branch
      %17 = sbr.rel (0) target = $region5
    $region4: #{tpu_custom_call.1} parent=1 // pred_region
      _
    $region5: #{tpu_custom_call.1} parent=1 // pred_fallthru
      _
    // Predicated region
    $region6: #{tpu_custom_call.1} parent=1 // pred_check
      _
    $region7: #{tpu_custom_call.1} parent=1 // pred_check_branch
      %19 = sbr.rel (0) target = $region9
    $region8: #{tpu_custom_call.1} parent=1 // pred_region
      _
    $region9: #{tpu_custom_call.1} parent=1 // pred_fallthru
      _
    // Predicated region
    $region10: #{tpu_custom_call.1} parent=1 // pred_check
      _
    $region11: #{tpu_custom_call.1} parent=1 // pred_check_branch
      %21 = sbr.rel (0) target = $region13
    $region12: #{tpu_custom_call.1} parent=1 // pred_region
      _
    $region13: #{tpu_custom_call.1} parent=1 // pred_fallthru
      _
    // Predicated region
    $region14: #{tpu_custom_call.1} parent=1 // pred_check
      _
    $region15: #{tpu_custom_call.1} parent=1 // pred_check_branch
      %23 = sbr.rel (0) target = $region17
    $region16: #{tpu_custom_call.1} parent=1 // pred_region
      _
    $region17: #{tpu_custom_call.1} parent=1 // pred_fallthru
      _
    // Predicated region
    $region18: #{tpu_custom_call.1} parent=1 // pred_check
      _
    $region19: #{tpu_custom_call.1} parent=1 // pred_check_branch
      %25 = sbr.rel (0) target = $region21
    $region20: #{tpu_custom_call.1} parent=1 // pred_region
      _
    $region21: #{tpu_custom_call.1} parent=1 // pred_fallthru
      _
    // Predicated region
    $region22: #{tpu_custom_call.1} parent=1 // pred_check
      _
    $region23: #{tpu_custom_call.1} parent=1 // pred_check_branch
      %27 = sbr.rel (0) target = $region25
    $region24: #{tpu_custom_call.1} parent=1 // pred_region
      _
    $region25: #{tpu_custom_call.1} parent=1 // pred_fallthru
      _
    // Predicated region
    $region26: #{tpu_custom_call.1} parent=1 // pred_check
      _
    $region27: #{tpu_custom_call.1} parent=1 // pred_check_branch
      %29 = sbr.rel (0) target = $region29
    $region28: #{tpu_custom_call.1} parent=1 // pred_region
      _
    $region29: #{tpu_custom_call.1} parent=1 // pred_fallthru
      _
    // Predicated region
    $region30: #{tpu_custom_call.1} parent=1 // pred_check
      _
    $region31: #{tpu_custom_call.1} parent=1 // pred_check_branch
      %31 = sbr.rel (0) target = $region33
    $region32: #{tpu_custom_call.1} parent=1 // pred_region
      _
    $region33: #{tpu_custom_call.1} parent=1 // pred_fallthru
      _
    // Predicated region
    $region34: #{tpu_custom_call.1} parent=1 // pred_check
      _
    $region35: #{tpu_custom_call.1} parent=1 // pred_check_branch
      %33 = sbr.rel (0) target = $region37
    $region36: #{tpu_custom_call.1} parent=1 // pred_region
      _
    $region37: #{tpu_custom_call.1} parent=1 // pred_fallthru
      _
    // Predicated region
    $region38: #{tpu_custom_call.1} parent=1 // pred_check
      _
    $region39: #{tpu_custom_call.1} parent=1 // pred_check_branch
      %35 = sbr.rel (0) target = $region41
    $region40: #{tpu_custom_call.1} parent=1 // pred_region
      _
    $region41: #{tpu_custom_call.1} parent=1 // pred_fallthru
      _
    %v36 = vld [vmem:[%s0] sm:$0xff]
    %v37 = vld [vmem:[%s0 + $0x8] sm:$0xff]
    %v38 = vld [vmem:[%s1] sm:$0xff]
    %v39 = vld [vmem:[%s1 + $0x8] sm:$0xff]
    %v40 = vld [vmem:[%s4] sm:$0xff]
    %v41 = vld [vmem:[%s4 + $0x8] sm:$0xff]
    %v42 = vld [vmem:[%s5] sm:$0x1]
    %v44 = vlaneseq
    %v45 = vshrl.u32 %v44, 7
    %v46 = vsub.s32 0, %v45
    %v47 = vrot.slane %v42, %v46
    %vm49 = vcmask 130048
    %v51 = vsel %vm49, %v36, 0
    %v54 = vsel %vm49, %v37, 0
    %56 = vmatprep.subr.mxu0 0.0
    %57 = vmatpush1.msra.mxu0 %v40
    %58 = vmatprep.subr.mxu0 0.0
    %59 = vmatpush1.msra.mxu0 %v41
    %60 = vmatprep.subr.mxu0 0.0
    %61 = vmatpush1.msra.mxu0 0.0
    %62 = vmatprep.subr.mxu0 0.0
    %63 = vmatpush1.msra.mxu0 0.0
    %64 = vmatprep.subr.mxu0 0.0
    %65 = vmatpush1.msra.mxu0 0.0
    %66 = vmatprep.subr.mxu0 0.0
    %67 = vmatpush1.msra.mxu0 0.0
    %68 = vmatprep.subr.mxu0 0.0
    %69 = vmatpush1.msra.mxu0 0.0
    %70 = vmatprep.subr.mxu0 0.0
    %71 = vmatpush1.msra.mxu0 0.0
    %72 = vmatprep.subr.mxu0 0.0
    %73 = vmatpush1.msra.mxu0 0.0
    %74 = vmatprep.subr.mxu0 0.0
    %75 = vmatpush1.msra.mxu0 0.0
    %76 = vmatprep.subr.mxu0 0.0
    %77 = vmatpush1.msra.mxu0 0.0
    %78 = vmatprep.subr.mxu0 0.0
    %79 = vmatpush1.msra.mxu0 0.0
    %80 = vmatprep.subr.mxu0 0.0
    %81 = vmatpush1.msra.mxu0 0.0
    %82 = vmatprep.subr.mxu0 0.0
    %83 = vmatpush1.msra.mxu0 0.0
    %84 = vmatprep.subr.mxu0 0.0
    %85 = vmatpush1.msra.mxu0 0.0
    %86 = vmatprep.subr.mxu0 0.0
    %87 = vmatpush1.msra.mxu0 0.0
    %88 = vmatprep.subr.mxu0 0.0
    %89 = vmatpush1.msra.mxu0 0.0
    %90 = vmatprep.subr.mxu0 0.0
    %91 = vmatpush1.msra.mxu0 0.0
    %92 = vmatprep.subr.mxu0 0.0
    %93 = vmatpush1.msra.mxu0 0.0
    %94 = vmatprep.subr.mxu0 0.0
    %95 = vmatpush1.msra.mxu0 0.0
    %96 = vmatprep.subr.mxu0 0.0
    %97 = vmatpush1.msra.mxu0 0.0
    %98 = vmatprep.subr.mxu0 0.0
    %99 = vmatpush1.msra.mxu0 0.0
    %100 = vmatprep.subr.mxu0 0.0
    %101 = vmatpush1.msra.mxu0 0.0
    %102 = vmatprep.subr.mxu0 0.0
    %103 = vmatpush1.msra.mxu0 0.0
    %104 = vmatprep.subr.mxu0 0.0
    %105 = vmatpush1.msra.mxu0 0.0
    %106 = vmatprep.subr.mxu0 0.0
    %107 = vmatpush1.msra.mxu0 0.0
    %108 = vmatprep.subr.mxu0 0.0
    %109 = vmatpush1.msra.mxu0 0.0
    %110 = vmatprep.subr.mxu0 0.0
    %111 = vmatpush1.msra.mxu0 0.0
    %112 = vmatprep.subr.mxu0 0.0
    %113 = vmatpush1.msra.mxu0 0.0
    %114 = vmatprep.subr.mxu0 0.0
    %115 = vmatpush1.msra.mxu0 0.0
    %116 = vmatprep.subr.mxu0 0.0
    %117 = vmatpush1.msra.mxu0 0.0
    %118 = vmatprep.subr.mxu0 0.0
    %119 = vmatpush1.msra.mxu0 0.0
    %120 = vmatprep.mubr.f32.mxu0 0.0
    %121 = vmatmul.mubr.f32.gmra.mrb[0].mxu0 %v51
    %v122 = vpop.f32.mrb[0].mxu0
    %v123 = vadd.f32 %v47, %v122
    %v124 = vpop.f32.mrb[0].mxu0
    %125 = vmatprep.mubr.f32.mxu0 0.0
    %126 = vmatmul.mubr.f32.gmra.mrb[0].mxu0 %v54
    %v127 = vpop.f32.mrb[0].mxu0
    %v128 = vadd.f32 %v47, %v127
    %v129 = vpop.f32.mrb[0].mxu0
    %130 = vdwg.mxu0
    %v131 = vld [vmem:[%s6] sm:$0xff]
    %v132 = vld [vmem:[%s6 + $0x8] sm:$0xff]
    %v133 = vld [vmem:[%s7] sm:$0x1]
    %v135 = vlaneseq
    %v136 = vshrl.u32 %v135, 7
    %v137 = vsub.s32 0, %v136
    %v138 = vrot.slane %v133, %v137
    %v141 = vsel %vm49, %v38, 0
    %v144 = vsel %vm49, %v39, 0
    %146 = vmatprep.subr.mxu0 0.0
    %147 = vmatpush1.msra.mxu0 %v131
    %148 = vmatprep.subr.mxu0 0.0
    %149 = vmatpush1.msra.mxu0 %v132
    %150 = vmatprep.subr.mxu0 0.0
    %151 = vmatpush1.msra.mxu0 0.0
    %152 = vmatprep.subr.mxu0 0.0
    %153 = vmatpush1.msra.mxu0 0.0
    %154 = vmatprep.subr.mxu0 0.0
    %155 = vmatpush1.msra.mxu0 0.0
    %156 = vmatprep.subr.mxu0 0.0
    %157 = vmatpush1.msra.mxu0 0.0
    %158 = vmatprep.subr.mxu0 0.0
    %159 = vmatpush1.msra.mxu0 0.0
    %160 = vmatprep.subr.mxu0 0.0
    %161 = vmatpush1.msra.mxu0 0.0
    %162 = vmatprep.subr.mxu0 0.0
    %163 = vmatpush1.msra.mxu0 0.0
    %164 = vmatprep.subr.mxu0 0.0
    %165 = vmatpush1.msra.mxu0 0.0
    %166 = vmatprep.subr.mxu0 0.0
    %167 = vmatpush1.msra.mxu0 0.0
    %168 = vmatprep.subr.mxu0 0.0
    %169 = vmatpush1.msra.mxu0 0.0
    %170 = vmatprep.subr.mxu0 0.0
    %171 = vmatpush1.msra.mxu0 0.0
    %172 = vmatprep.subr.mxu0 0.0
    %173 = vmatpush1.msra.mxu0 0.0
    %174 = vmatprep.subr.mxu0 0.0
    %175 = vmatpush1.msra.mxu0 0.0
    %176 = vmatprep.subr.mxu0 0.0
    %177 = vmatpush1.msra.mxu0 0.0
    %178 = vmatprep.subr.mxu0 0.0
    %179 = vmatpush1.msra.mxu0 0.0
    %180 = vmatprep.subr.mxu0 0.0
    %181 = vmatpush1.msra.mxu0 0.0
    %182 = vmatprep.subr.mxu0 0.0
    %183 = vmatpush1.msra.mxu0 0.0
    %184 = vmatprep.subr.mxu0 0.0
    %185 = vmatpush1.msra.mxu0 0.0
    %186 = vmatprep.subr.mxu0 0.0
    %187 = vmatpush1.msra.mxu0 0.0
    %188 = vmatprep.subr.mxu0 0.0
    %189 = vmatpush1.msra.mxu0 0.0
    %190 = vmatprep.subr.mxu0 0.0
    %191 = vmatpush1.msra.mxu0 0.0
    %192 = vmatprep.subr.mxu0 0.0
    %193 = vmatpush1.msra.mxu0 0.0
    %194 = vmatprep.subr.mxu0 0.0
    %195 = vmatpush1.msra.mxu0 0.0
    %196 = vmatprep.subr.mxu0 0.0
    %197 = vmatpush1.msra.mxu0 0.0
    %198 = vmatprep.subr.mxu0 0.0
    %199 = vmatpush1.msra.mxu0 0.0
    %200 = vmatprep.subr.mxu0 0.0
    %201 = vmatpush1.msra.mxu0 0.0
    %202 = vmatprep.subr.mxu0 0.0
    %203 = vmatpush1.msra.mxu0 0.0
    %204 = vmatprep.subr.mxu0 0.0
    %205 = vmatpush1.msra.mxu0 0.0
    %206 = vmatprep.subr.mxu0 0.0
    %207 = vmatpush1.msra.mxu0 0.0
    %208 = vmatprep.subr.mxu0 0.0
    %209 = vmatpush1.msra.mxu0 0.0
    %210 = vmatprep.mubr.f32.mxu0 0.0
    %211 = vmatmul.mubr.f32.gmra.mrb[0].mxu0 %v141
    %v212 = vpop.f32.mrb[0].mxu0
    %v213 = vadd.f32 %v138, %v212
    %v214 = vpop.f32.mrb[0].mxu0
    %215 = vmatprep.mubr.f32.mxu0 0.0
    %216 = vmatmul.mubr.f32.gmra.mrb[0].mxu0 %v144
    %v217 = vpop.f32.mrb[0].mxu0
    %v218 = vadd.f32 %v138, %v217
    %v219 = vpop.f32.mrb[0].mxu0
    %220 = vdwg.mxu0
    %v221 = vmul.f32 %v123, 0.35355338
    %v222 = vmul.f32 %v128, 0.35355338
    %v223 = vld [vmem:[%s3] sm:$0xff]
    %v224 = vld [vmem:[%s3 + $0x8] sm:$0xff]
    %vm225 = vcmp.ne.f32.partialorder %v223, 0.0
    %vm226 = vcmp.ne.f32.partialorder %v224, 0.0
    %v227 = vsel %vm225, 1, 0
    %v228 = vsel %vm226, 1, 0
    %v229 = vcvt.s32.f32 %v227
    %v230 = vcvt.s32.f32 %v228
    %v231 = vld [vmem:[%s2] sm:$0xff]
    %v232 = vld [vmem:[%s2 + $0x8] sm:$0xff]
    %v233 = vmul.f32 %v229, %v231
    %v234 = vmul.f32 %v230, %v232
    %237 = vrot.lane.b32.xlu0 %v229, 4
    %v238 = vpop.permute.xlu0 %237
    %239 = vrot.lane.b32.xlu0 %v230, 4
    %v240 = vpop.permute.xlu0 %239
    %vm243 = vcmask 31744
    %v244 = vsel %vm243, %v233, %v238
    %v245 = vsel %vm243, %v234, %v240
    %vm246 = vcmask 64512
    %v248 = vsel %vm246, %v221, 0
    %v251 = vsel %vm246, %v213, 0
    %253 = vmatprep.subr.mxu0 0.0
    %254 = vmatpush1.xpose.msra.mxu0 %v251
    %255 = vmatprep.subr.mxu0 0.0
    %256 = vmatpush1.xpose.msra.mxu0 0.0
    %257 = vmatprep.subr.mxu0 0.0
    %258 = vmatpush1.xpose.msra.mxu0 0.0
    %259 = vmatprep.subr.mxu0 0.0
    %260 = vmatpush1.xpose.msra.mxu0 0.0
    %261 = vmatprep.subr.mxu0 0.0
    %262 = vmatpush1.xpose.msra.mxu0 0.0
    %263 = vmatprep.subr.mxu0 0.0
    %264 = vmatpush1.xpose.msra.mxu0 0.0
    %265 = vmatprep.subr.mxu0 0.0
    %266 = vmatpush1.xpose.msra.mxu0 0.0
    %267 = vmatprep.subr.mxu0 0.0
    %268 = vmatpush1.xpose.msra.mxu0 0.0
    %269 = vmatprep.subr.mxu0 0.0
    %270 = vmatpush1.xpose.msra.mxu0 0.0
    %271 = vmatprep.subr.mxu0 0.0
    %272 = vmatpush1.xpose.msra.mxu0 0.0
    %273 = vmatprep.subr.mxu0 0.0
    %274 = vmatpush1.xpose.msra.mxu0 0.0
    %275 = vmatprep.subr.mxu0 0.0
    %276 = vmatpush1.xpose.msra.mxu0 0.0
    %277 = vmatprep.subr.mxu0 0.0
    %278 = vmatpush1.xpose.msra.mxu0 0.0
    %279 = vmatprep.subr.mxu0 0.0
    %280 = vmatpush1.xpose.msra.mxu0 0.0
    %281 = vmatprep.subr.mxu0 0.0
    %282 = vmatpush1.xpose.msra.mxu0 0.0
    %283 = vmatprep.subr.mxu0 0.0
    %284 = vmatpush1.xpose.msra.mxu0 0.0
    %285 = vmatprep.subr.mxu0 0.0
    %286 = vmatpush1.xpose.msra.mxu0 0.0
    %287 = vmatprep.subr.mxu0 0.0
    %288 = vmatpush1.xpose.msra.mxu0 0.0
    %289 = vmatprep.subr.mxu0 0.0
    %290 = vmatpush1.xpose.msra.mxu0 0.0
    %291 = vmatprep.subr.mxu0 0.0
    %292 = vmatpush1.xpose.msra.mxu0 0.0
    %293 = vmatprep.subr.mxu0 0.0
    %294 = vmatpush1.xpose.msra.mxu0 0.0
    %295 = vmatprep.subr.mxu0 0.0
    %296 = vmatpush1.xpose.msra.mxu0 0.0
    %297 = vmatprep.subr.mxu0 0.0
    %298 = vmatpush1.xpose.msra.mxu0 0.0
    %299 = vmatprep.subr.mxu0 0.0
    %300 = vmatpush1.xpose.msra.mxu0 0.0
    %301 = vmatprep.subr.mxu0 0.0
    %302 = vmatpush1.xpose.msra.mxu0 0.0
    %303 = vmatprep.subr.mxu0 0.0
    %304 = vmatpush1.xpose.msra.mxu0 0.0
    %305 = vmatprep.subr.mxu0 0.0
    %306 = vmatpush1.xpose.msra.mxu0 0.0
    %307 = vmatprep.subr.mxu0 0.0
    %308 = vmatpush1.xpose.msra.mxu0 0.0
    %309 = vmatprep.subr.mxu0 0.0
    %310 = vmatpush1.xpose.msra.mxu0 0.0
    %311 = vmatprep.subr.mxu0 0.0
    %312 = vmatpush1.xpose.msra.mxu0 0.0
    %313 = vmatprep.subr.mxu0 0.0
    %314 = vmatpush1.xpose.msra.mxu0 0.0
    %315 = vmatprep.subr.mxu0 0.0
    %316 = vmatpush1.xpose.msra.mxu0 0.0
    %317 = vmatprep.mubr.f32.mxu0 0.0
    %318 = vmatmul.mubr.f32.gmra.mrb[0].mxu0 %v248
    %v319 = vpop.f32.mrb[0].mxu0
    %v320 = vadd.f32 0.0, %v319
    %v321 = vpop.f32.mrb[0].mxu0
    %322 = vdwg.mxu0
    %v324 = vsel %vm246, %v222, 0
    %v327 = vsel %vm246, %v218, 0
    %329 = vmatprep.subr.mxu0 0.0
    %330 = vmatpush1.xpose.msra.mxu0 %v327
    %331 = vmatprep.subr.mxu0 0.0
    %332 = vmatpush1.xpose.msra.mxu0 0.0
    %333 = vmatprep.subr.mxu0 0.0
    %334 = vmatpush1.xpose.msra.mxu0 0.0
    %335 = vmatprep.subr.mxu0 0.0
    %336 = vmatpush1.xpose.msra.mxu0 0.0
    %337 = vmatprep.subr.mxu0 0.0
    %338 = vmatpush1.xpose.msra.mxu0 0.0
    %339 = vmatprep.subr.mxu0 0.0
    %340 = vmatpush1.xpose.msra.mxu0 0.0
    %341 = vmatprep.subr.mxu0 0.0
    %342 = vmatpush1.xpose.msra.mxu0 0.0
    %343 = vmatprep.subr.mxu0 0.0
    %344 = vmatpush1.xpose.msra.mxu0 0.0
    %345 = vmatprep.subr.mxu0 0.0
    %346 = vmatpush1.xpose.msra.mxu0 0.0
    %347 = vmatprep.subr.mxu0 0.0
    %348 = vmatpush1.xpose.msra.mxu0 0.0
    %349 = vmatprep.subr.mxu0 0.0
    %350 = vmatpush1.xpose.msra.mxu0 0.0
    %351 = vmatprep.subr.mxu0 0.0
    %352 = vmatpush1.xpose.msra.mxu0 0.0
    %353 = vmatprep.subr.mxu0 0.0
    %354 = vmatpush1.xpose.msra.mxu0 0.0
    %355 = vmatprep.subr.mxu0 0.0
    %356 = vmatpush1.xpose.msra.mxu0 0.0
    %357 = vmatprep.subr.mxu0 0.0
    %358 = vmatpush1.xpose.msra.mxu0 0.0
    %359 = vmatprep.subr.mxu0 0.0
    %360 = vmatpush1.xpose.msra.mxu0 0.0
    %361 = vmatprep.subr.mxu0 0.0
    %362 = vmatpush1.xpose.msra.mxu0 0.0
    %363 = vmatprep.subr.mxu0 0.0
    %364 = vmatpush1.xpose.msra.mxu0 0.0
    %365 = vmatprep.subr.mxu0 0.0
    %366 = vmatpush1.xpose.msra.mxu0 0.0
    %367 = vmatprep.subr.mxu0 0.0
    %368 = vmatpush1.xpose.msra.mxu0 0.0
    %369 = vmatprep.subr.mxu0 0.0
    %370 = vmatpush1.xpose.msra.mxu0 0.0
    %371 = vmatprep.subr.mxu0 0.0
    %372 = vmatpush1.xpose.msra.mxu0 0.0
    %373 = vmatprep.subr.mxu0 0.0
    %374 = vmatpush1.xpose.msra.mxu0 0.0
    %375 = vmatprep.subr.mxu0 0.0
    %376 = vmatpush1.xpose.msra.mxu0 0.0
    %377 = vmatprep.subr.mxu0 0.0
    %378 = vmatpush1.xpose.msra.mxu0 0.0
    %379 = vmatprep.subr.mxu0 0.0
    %380 = vmatpush1.xpose.msra.mxu0 0.0
    %381 = vmatprep.subr.mxu0 0.0
    %382 = vmatpush1.xpose.msra.mxu0 0.0
    %383 = vmatprep.subr.mxu0 0.0
    %384 = vmatpush1.xpose.msra.mxu0 0.0
    %385 = vmatprep.subr.mxu0 0.0
    %386 = vmatpush1.xpose.msra.mxu0 0.0
    %387 = vmatprep.subr.mxu0 0.0
    %388 = vmatpush1.xpose.msra.mxu0 0.0
    %389 = vmatprep.subr.mxu0 0.0
    %390 = vmatpush1.xpose.msra.mxu0 0.0
    %391 = vmatprep.subr.mxu0 0.0
    %392 = vmatpush1.xpose.msra.mxu0 0.0
    %393 = vmatprep.mubr.f32.mxu0 0.0
    %394 = vmatmul.mubr.f32.gmra.mrb[0].mxu0 %v324
    %v395 = vpop.f32.mrb[0].mxu0
    %v396 = vadd.f32 0.0, %v395
    %v397 = vpop.f32.mrb[0].mxu0
    %398 = vdwg.mxu0
    %v399 = vsel %vm246, %v320, -inf
    %400 = vmax.xlane.f32.xlu0 %v399
    %v401 = vpop.xlane.xlu0 %400
    %v402 = vsel %vm246, %v396, -inf
    %403 = vmax.xlane.f32.xlu0 %v402
    %v404 = vpop.xlane.xlu0 %403
    %v405 = vsub.f32 %v320, %v401
    %v406 = vsub.f32 %v396, %v404
    %v407 = vmul.f32 %v405, 1.442695
    %v408 = vpow.pop %v407
    %v409 = vmul.f32 %v406, 1.442695
    %v410 = vpow.pop %v409
    %v412 = vsel %vm246, %v408, 0
    %414 = vmatprep.subr.mxu0 0.0
    %415 = vmatpush1.msra.mxu0 %v244
    %416 = vmatprep.subr.mxu0 0.0
    %417 = vmatpush1.msra.mxu0 0.0
    %418 = vmatprep.subr.mxu0 0.0
    %419 = vmatpush1.msra.mxu0 0.0
    %420 = vmatprep.subr.mxu0 0.0
    %421 = vmatpush1.msra.mxu0 0.0
    %422 = vmatprep.subr.mxu0 0.0
    %423 = vmatpush1.msra.mxu0 0.0
    %424 = vmatprep.subr.mxu0 0.0
    %425 = vmatpush1.msra.mxu0 0.0
    %426 = vmatprep.subr.mxu0 0.0
    %427 = vmatpush1.msra.mxu0 0.0
    %428 = vmatprep.subr.mxu0 0.0
    %429 = vmatpush1.msra.mxu0 0.0
    %430 = vmatprep.subr.mxu0 0.0
    %431 = vmatpush1.msra.mxu0 0.0
    %432 = vmatprep.subr.mxu0 0.0
    %433 = vmatpush1.msra.mxu0 0.0
    %434 = vmatprep.subr.mxu0 0.0
    %435 = vmatpush1.msra.mxu0 0.0
    %436 = vmatprep.subr.mxu0 0.0
    %437 = vmatpush1.msra.mxu0 0.0
    %438 = vmatprep.subr.mxu0 0.0
    %439 = vmatpush1.msra.mxu0 0.0
    %440 = vmatprep.subr.mxu0 0.0
    %441 = vmatpush1.msra.mxu0 0.0
    %442 = vmatprep.subr.mxu0 0.0
    %443 = vmatpush1.msra.mxu0 0.0
    %444 = vmatprep.subr.mxu0 0.0
    %445 = vmatpush1.msra.mxu0 0.0
    %446 = vmatprep.subr.mxu0 0.0
    %447 = vmatpush1.msra.mxu0 0.0
    %448 = vmatprep.subr.mxu0 0.0
    %449 = vmatpush1.msra.mxu0 0.0
    %450 = vmatprep.subr.mxu0 0.0
    %451 = vmatpush1.msra.mxu0 0.0
    %452 = vmatprep.subr.mxu0 0.0
    %453 = vmatpush1.msra.mxu0 0.0
    %454 = vmatprep.subr.mxu0 0.0
    %455 = vmatpush1.msra.mxu0 0.0
    %456 = vmatprep.subr.mxu0 0.0
    %457 = vmatpush1.msra.mxu0 0.0
    %458 = vmatprep.subr.mxu0 0.0
    %459 = vmatpush1.msra.mxu0 0.0
    %460 = vmatprep.subr.mxu0 0.0
    %461 = vmatpush1.msra.mxu0 0.0
    %462 = vmatprep.subr.mxu0 0.0
    %463 = vmatpush1.msra.mxu0 0.0
    %464 = vmatprep.subr.mxu0 0.0
    %465 = vmatpush1.msra.mxu0 0.0
    %466 = vmatprep.subr.mxu0 0.0
    %467 = vmatpush1.msra.mxu0 0.0
    %468 = vmatprep.subr.mxu0 0.0
    %469 = vmatpush1.msra.mxu0 0.0
    %470 = vmatprep.subr.mxu0 0.0
    %471 = vmatpush1.msra.mxu0 0.0
    %472 = vmatprep.subr.mxu0 0.0
    %473 = vmatpush1.msra.mxu0 0.0
    %474 = vmatprep.subr.mxu0 0.0
    %475 = vmatpush1.msra.mxu0 0.0
    %476 = vmatprep.subr.mxu0 0.0
    %477 = vmatpush1.msra.mxu0 0.0
    %478 = vmatprep.mubr.f32.mxu0 0.0
    %479 = vmatmul.mubr.f32.gmra.mrb[0].mxu0 %v412
    %v480 = vpop.f32.mrb[0].mxu0
    %v481 = vadd.f32 0.0, %v480
    %v482 = vpop.f32.mrb[0].mxu0
    %483 = vdwg.mxu0
    %v485 = vsel %vm246, %v410, 0
    %487 = vmatprep.subr.mxu0 0.0
    %488 = vmatpush1.msra.mxu0 %v245
    %489 = vmatprep.subr.mxu0 0.0
    %490 = vmatpush1.msra.mxu0 0.0
    %491 = vmatprep.subr.mxu0 0.0
    %492 = vmatpush1.msra.mxu0 0.0
    %493 = vmatprep.subr.mxu0 0.0
    %494 = vmatpush1.msra.mxu0 0.0
    %495 = vmatprep.subr.mxu0 0.0
    %496 = vmatpush1.msra.mxu0 0.0
    %497 = vmatprep.subr.mxu0 0.0
    %498 = vmatpush1.msra.mxu0 0.0
    %499 = vmatprep.subr.mxu0 0.0
    %500 = vmatpush1.msra.mxu0 0.0
    %501 = vmatprep.subr.mxu0 0.0
    %502 = vmatpush1.msra.mxu0 0.0
    %503 = vmatprep.subr.mxu0 0.0
    %504 = vmatpush1.msra.mxu0 0.0
    %505 = vmatprep.subr.mxu0 0.0
    %506 = vmatpush1.msra.mxu0 0.0
    %507 = vmatprep.subr.mxu0 0.0
    %508 = vmatpush1.msra.mxu0 0.0
    %509 = vmatprep.subr.mxu0 0.0
    %510 = vmatpush1.msra.mxu0 0.0
    %511 = vmatprep.subr.mxu0 0.0
    %512 = vmatpush1.msra.mxu0 0.0
    %513 = vmatprep.subr.mxu0 0.0
    %514 = vmatpush1.msra.mxu0 0.0
    %515 = vmatprep.subr.mxu0 0.0
    %516 = vmatpush1.msra.mxu0 0.0
    %517 = vmatprep.subr.mxu0 0.0
    %518 = vmatpush1.msra.mxu0 0.0
    %519 = vmatprep.subr.mxu0 0.0
    %520 = vmatpush1.msra.mxu0 0.0
    %521 = vmatprep.subr.mxu0 0.0
    %522 = vmatpush1.msra.mxu0 0.0
    %523 = vmatprep.subr.mxu0 0.0
    %524 = vmatpush1.msra.mxu0 0.0
    %525 = vmatprep.subr.mxu0 0.0
    %526 = vmatpush1.msra.mxu0 0.0
    %527 = vmatprep.subr.mxu0 0.0
    %528 = vmatpush1.msra.mxu0 0.0
    %529 = vmatprep.subr.mxu0 0.0
    %530 = vmatpush1.msra.mxu0 0.0
    %531 = vmatprep.subr.mxu0 0.0
    %532 = vmatpush1.msra.mxu0 0.0
    %533 = vmatprep.subr.mxu0 0.0
    %534 = vmatpush1.msra.mxu0 0.0
    %535 = vmatprep.subr.mxu0 0.0
    %536 = vmatpush1.msra.mxu0 0.0
    %537 = vmatprep.subr.mxu0 0.0
    %538 = vmatpush1.msra.mxu0 0.0
    %539 = vmatprep.subr.mxu0 0.0
    %540 = vmatpush1.msra.mxu0 0.0
    %541 = vmatprep.subr.mxu0 0.0
    %542 = vmatpush1.msra.mxu0 0.0
    %543 = vmatprep.subr.mxu0 0.0
    %544 = vmatpush1.msra.mxu0 0.0
    %545 = vmatprep.subr.mxu0 0.0
    %546 = vmatpush1.msra.mxu0 0.0
    %547 = vmatprep.subr.mxu0 0.0
    %548 = vmatpush1.msra.mxu0 0.0
    %549 = vmatprep.subr.mxu0 0.0
    %550 = vmatpush1.msra.mxu0 0.0
    %551 = vmatprep.mubr.f32.mxu0 0.0
    %552 = vmatmul.mubr.f32.gmra.mrb[0].mxu0 %v485
    %v553 = vpop.f32.mrb[0].mxu0
    %v554 = vadd.f32 0.0, %v553
    %v555 = vpop.f32.mrb[0].mxu0
    %556 = vdwg.mxu0
    %v557 = vrcp.pop %v481
    %v558 = vrcp.pop %v554
    %561 = vrot.lane.b32.xlu0 %v557, 124
    %v562 = vpop.permute.xlu0 %561
    %563 = vrot.lane.b32.xlu0 %v558, 124
    %v564 = vpop.permute.xlu0 %563
    %v567 = vmul.f32 %v481, %v562
    %v568 = vmul.f32 %v554, %v564
    %569 = vrot.lane.b32.xlu0 %v221, 120
    %v570 = vpop.permute.xlu0 %569
    %571 = vrot.lane.b32.xlu0 %v213, 120
    %v572 = vpop.permute.xlu0 %571
    %v573 = vsel %vm246, %v570, 0
    %v575 = vsel %vm246, %v572, 0
    %577 = vmatprep.subr.mxu0 0.0
    %578 = vmatpush1.xpose.msra.mxu0 %v575
    %579 = vmatprep.subr.mxu0 0.0
    %580 = vmatpush1.xpose.msra.mxu0 0.0
    %581 = vmatprep.subr.mxu0 0.0
    %582 = vmatpush1.xpose.msra.mxu0 0.0
    %583 = vmatprep.subr.mxu0 0.0
    %584 = vmatpush1.xpose.msra.mxu0 0.0
    %585 = vmatprep.subr.mxu0 0.0
    %586 = vmatpush1.xpose.msra.mxu0 0.0
    %587 = vmatprep.subr.mxu0 0.0
    %588 = vmatpush1.xpose.msra.mxu0 0.0
    %589 = vmatprep.subr.mxu0 0.0
    %590 = vmatpush1.xpose.msra.mxu0 0.0
    %591 = vmatprep.subr.mxu0 0.0
    %592 = vmatpush1.xpose.msra.mxu0 0.0
    %593 = vmatprep.subr.mxu0 0.0
    %594 = vmatpush1.xpose.msra.mxu0 0.0
    %595 = vmatprep.subr.mxu0 0.0
    %596 = vmatpush1.xpose.msra.mxu0 0.0
    %597 = vmatprep.subr.mxu0 0.0
    %598 = vmatpush1.xpose.msra.mxu0 0.0
    %599 = vmatprep.subr.mxu0 0.0
    %600 = vmatpush1.xpose.msra.mxu0 0.0
    %601 = vmatprep.subr.mxu0 0.0
    %602 = vmatpush1.xpose.msra.mxu0 0.0
    %603 = vmatprep.subr.mxu0 0.0
    %604 = vmatpush1.xpose.msra.mxu0 0.0
    %605 = vmatprep.subr.mxu0 0.0
    %606 = vmatpush1.xpose.msra.mxu0 0.0
    %607 = vmatprep.subr.mxu0 0.0
    %608 = vmatpush1.xpose.msra.mxu0 0.0
    %609 = vmatprep.subr.mxu0 0.0
    %610 = vmatpush1.xpose.msra.mxu0 0.0
    %611 = vmatprep.subr.mxu0 0.0
    %612 = vmatpush1.xpose.msra.mxu0 0.0
    %613 = vmatprep.subr.mxu0 0.0
    %614 = vmatpush1.xpose.msra.mxu0 0.0
    %615 = vmatprep.subr.mxu0 0.0
    %616 = vmatpush1.xpose.msra.mxu0 0.0
    %617 = vmatprep.subr.mxu0 0.0
    %618 = vmatpush1.xpose.msra.mxu0 0.0
    %619 = vmatprep.subr.mxu0 0.0
    %620 = vmatpush1.xpose.msra.mxu0 0.0
    %621 = vmatprep.subr.mxu0 0.0
    %622 = vmatpush1.xpose.msra.mxu0 0.0
    %623 = vmatprep.subr.mxu0 0.0
    %624 = vmatpush1.xpose.msra.mxu0 0.0
    %625 = vmatprep.subr.mxu0 0.0
    %626 = vmatpush1.xpose.msra.mxu0 0.0
    %627 = vmatprep.subr.mxu0 0.0
    %628 = vmatpush1.xpose.msra.mxu0 0.0
    %629 = vmatprep.subr.mxu0 0.0
    %630 = vmatpush1.xpose.msra.mxu0 0.0
    %631 = vmatprep.subr.mxu0 0.0
    %632 = vmatpush1.xpose.msra.mxu0 0.0
    %633 = vmatprep.subr.mxu0 0.0
    %634 = vmatpush1.xpose.msra.mxu0 0.0
    %635 = vmatprep.subr.mxu0 0.0
    %636 = vmatpush1.xpose.msra.mxu0 0.0
    %637 = vmatprep.subr.mxu0 0.0
    %638 = vmatpush1.xpose.msra.mxu0 0.0
    %639 = vmatprep.subr.mxu0 0.0
    %640 = vmatpush1.xpose.msra.mxu0 0.0
    %641 = vmatprep.mubr.f32.mxu0 0.0
    %642 = vmatmul.mubr.f32.gmra.mrb[0].mxu0 %v573
    %v643 = vpop.f32.mrb[0].mxu0
    %v644 = vadd.f32 0.0, %v643
    %v645 = vpop.f32.mrb[0].mxu0
    %646 = vdwg.mxu0
    %647 = vrot.lane.b32.xlu0 %v222, 120
    %v648 = vpop.permute.xlu0 %647
    %649 = vrot.lane.b32.xlu0 %v218, 120
    %v650 = vpop.permute.xlu0 %649
    %v651 = vsel %vm246, %v648, 0
    %v653 = vsel %vm246, %v650, 0
    %655 = vmatprep.subr.mxu0 0.0
    %656 = vmatpush1.xpose.msra.mxu0 %v653
    %657 = vmatprep.subr.mxu0 0.0
    %658 = vmatpush1.xpose.msra.mxu0 0.0
    %659 = vmatprep.subr.mxu0 0.0
    %660 = vmatpush1.xpose.msra.mxu0 0.0
    %661 = vmatprep.subr.mxu0 0.0
    %662 = vmatpush1.xpose.msra.mxu0 0.0
    %663 = vmatprep.subr.mxu0 0.0
    %664 = vmatpush1.xpose.msra.mxu0 0.0
    %665 = vmatprep.subr.mxu0 0.0
    %666 = vmatpush1.xpose.msra.mxu0 0.0
    %667 = vmatprep.subr.mxu0 0.0
    %668 = vmatpush1.xpose.msra.mxu0 0.0
    %669 = vmatprep.subr.mxu0 0.0
    %670 = vmatpush1.xpose.msra.mxu0 0.0
    %671 = vmatprep.subr.mxu0 0.0
    %672 = vmatpush1.xpose.msra.mxu0 0.0
    %673 = vmatprep.subr.mxu0 0.0
    %674 = vmatpush1.xpose.msra.mxu0 0.0
    %675 = vmatprep.subr.mxu0 0.0
    %676 = vmatpush1.xpose.msra.mxu0 0.0
    %677 = vmatprep.subr.mxu0 0.0
    %678 = vmatpush1.xpose.msra.mxu0 0.0
    %679 = vmatprep.subr.mxu0 0.0
    %680 = vmatpush1.xpose.msra.mxu0 0.0
    %681 = vmatprep.subr.mxu0 0.0
    %682 = vmatpush1.xpose.msra.mxu0 0.0
    %683 = vmatprep.subr.mxu0 0.0
    %684 = vmatpush1.xpose.msra.mxu0 0.0
    %685 = vmatprep.subr.mxu0 0.0
    %686 = vmatpush1.xpose.msra.mxu0 0.0
    %687 = vmatprep.subr.mxu0 0.0
    %688 = vmatpush1.xpose.msra.mxu0 0.0
    %689 = vmatprep.subr.mxu0 0.0
    %690 = vmatpush1.xpose.msra.mxu0 0.0
    %691 = vmatprep.subr.mxu0 0.0
    %692 = vmatpush1.xpose.msra.mxu0 0.0
    %693 = vmatprep.subr.mxu0 0.0
    %694 = vmatpush1.xpose.msra.mxu0 0.0
    %695 = vmatprep.subr.mxu0 0.0
    %696 = vmatpush1.xpose.msra.mxu0 0.0
    %697 = vmatprep.subr.mxu0 0.0
    %698 = vmatpush1.xpose.msra.mxu0 0.0
    %699 = vmatprep.subr.mxu0 0.0
    %700 = vmatpush1.xpose.msra.mxu0 0.0
    %701 = vmatprep.subr.mxu0 0.0
    %702 = vmatpush1.xpose.msra.mxu0 0.0
    %703 = vmatprep.subr.mxu0 0.0
    %704 = vmatpush1.xpose.msra.mxu0 0.0
    %705 = vmatprep.subr.mxu0 0.0
    %706 = vmatpush1.xpose.msra.mxu0 0.0
    %707 = vmatprep.subr.mxu0 0.0
    %708 = vmatpush1.xpose.msra.mxu0 0.0
    %709 = vmatprep.subr.mxu0 0.0
    %710 = vmatpush1.xpose.msra.mxu0 0.0
    %711 = vmatprep.subr.mxu0 0.0
    %712 = vmatpush1.xpose.msra.mxu0 0.0
    %713 = vmatprep.subr.mxu0 0.0
    %714 = vmatpush1.xpose.msra.mxu0 0.0
    %715 = vmatprep.subr.mxu0 0.0
    %716 = vmatpush1.xpose.msra.mxu0 0.0
    %717 = vmatprep.subr.mxu0 0.0
    %718 = vmatpush1.xpose.msra.mxu0 0.0
    %719 = vmatprep.mubr.f32.mxu0 0.0
    %720 = vmatmul.mubr.f32.gmra.mrb[0].mxu0 %v651
    %v721 = vpop.f32.mrb[0].mxu0
    %v722 = vadd.f32 0.0, %v721
    %v723 = vpop.f32.mrb[0].mxu0
    %724 = vdwg.mxu0
    %v725 = vsel %vm246, %v644, -inf
    %726 = vmax.xlane.f32.xlu0 %v725
    %v727 = vpop.xlane.xlu0 %726
    %v728 = vsel %vm246, %v722, -inf
    %729 = vmax.xlane.f32.xlu0 %v728
    %v730 = vpop.xlane.xlu0 %729
    %v731 = vsub.f32 %v644, %v727
    %v732 = vsub.f32 %v722, %v730
    %v733 = vmul.f32 %v731, 1.442695
    %v734 = vpow.pop %v733
    %v735 = vmul.f32 %v732, 1.442695
    %v736 = vpow.pop %v735
    %v738 = vsel %vm246, %v734, 0
    %740 = vmatprep.subr.mxu0 0.0
    %741 = vmatpush1.msra.mxu0 %v244
    %742 = vmatprep.subr.mxu0 0.0
    %743 = vmatpush1.msra.mxu0 0.0
    %744 = vmatprep.subr.mxu0 0.0
    %745 = vmatpush1.msra.mxu0 0.0
    %746 = vmatprep.subr.mxu0 0.0
    %747 = vmatpush1.msra.mxu0 0.0
    %748 = vmatprep.subr.mxu0 0.0
    %749 = vmatpush1.msra.mxu0 0.0
    %750 = vmatprep.subr.mxu0 0.0
    %751 = vmatpush1.msra.mxu0 0.0
    %752 = vmatprep.subr.mxu0 0.0
    %753 = vmatpush1.msra.mxu0 0.0
    %754 = vmatprep.subr.mxu0 0.0
    %755 = vmatpush1.msra.mxu0 0.0
    %756 = vmatprep.subr.mxu0 0.0
    %757 = vmatpush1.msra.mxu0 0.0
    %758 = vmatprep.subr.mxu0 0.0
    %759 = vmatpush1.msra.mxu0 0.0
    %760 = vmatprep.subr.mxu0 0.0
    %761 = vmatpush1.msra.mxu0 0.0
    %762 = vmatprep.subr.mxu0 0.0
    %763 = vmatpush1.msra.mxu0 0.0
    %764 = vmatprep.subr.mxu0 0.0
    %765 = vmatpush1.msra.mxu0 0.0
    %766 = vmatprep.subr.mxu0 0.0
    %767 = vmatpush1.msra.mxu0 0.0
    %768 = vmatprep.subr.mxu0 0.0
    %769 = vmatpush1.msra.mxu0 0.0
    %770 = vmatprep.subr.mxu0 0.0
    %771 = vmatpush1.msra.mxu0 0.0
    %772 = vmatprep.subr.mxu0 0.0
    %773 = vmatpush1.msra.mxu0 0.0
    %774 = vmatprep.subr.mxu0 0.0
    %775 = vmatpush1.msra.mxu0 0.0
    %776 = vmatprep.subr.mxu0 0.0
    %777 = vmatpush1.msra.mxu0 0.0
    %778 = vmatprep.subr.mxu0 0.0
    %779 = vmatpush1.msra.mxu0 0.0
    %780 = vmatprep.subr.mxu0 0.0
    %781 = vmatpush1.msra.mxu0 0.0
    %782 = vmatprep.subr.mxu0 0.0
    %783 = vmatpush1.msra.mxu0 0.0
    %784 = vmatprep.subr.mxu0 0.0
    %785 = vmatpush1.msra.mxu0 0.0
    %786 = vmatprep.subr.mxu0 0.0
    %787 = vmatpush1.msra.mxu0 0.0
    %788 = vmatprep.subr.mxu0 0.0
    %789 = vmatpush1.msra.mxu0 0.0
    %790 = vmatprep.subr.mxu0 0.0
    %791 = vmatpush1.msra.mxu0 0.0
    %792 = vmatprep.subr.mxu0 0.0
    %793 = vmatpush1.msra.mxu0 0.0
    %794 = vmatprep.subr.mxu0 0.0
    %795 = vmatpush1.msra.mxu0 0.0
    %796 = vmatprep.subr.mxu0 0.0
    %797 = vmatpush1.msra.mxu0 0.0
    %798 = vmatprep.subr.mxu0 0.0
    %799 = vmatpush1.msra.mxu0 0.0
    %800 = vmatprep.subr.mxu0 0.0
    %801 = vmatpush1.msra.mxu0 0.0
    %802 = vmatprep.subr.mxu0 0.0
    %803 = vmatpush1.msra.mxu0 0.0
    %804 = vmatprep.mubr.f32.mxu0 0.0
    %805 = vmatmul.mubr.f32.gmra.mrb[0].mxu0 %v738
    %v806 = vpop.f32.mrb[0].mxu0
    %v807 = vadd.f32 0.0, %v806
    %v808 = vpop.f32.mrb[0].mxu0
    %809 = vdwg.mxu0
    %v811 = vsel %vm246, %v736, 0
    %813 = vmatprep.subr.mxu0 0.0
    %814 = vmatpush1.msra.mxu0 %v245
    %815 = vmatprep.subr.mxu0 0.0
    %816 = vmatpush1.msra.mxu0 0.0
    %817 = vmatprep.subr.mxu0 0.0
    %818 = vmatpush1.msra.mxu0 0.0
    %819 = vmatprep.subr.mxu0 0.0
    %820 = vmatpush1.msra.mxu0 0.0
    %821 = vmatprep.subr.mxu0 0.0
    %822 = vmatpush1.msra.mxu0 0.0
    %823 = vmatprep.subr.mxu0 0.0
    %824 = vmatpush1.msra.mxu0 0.0
    %825 = vmatprep.subr.mxu0 0.0
    %826 = vmatpush1.msra.mxu0 0.0
    %827 = vmatprep.subr.mxu0 0.0
    %828 = vmatpush1.msra.mxu0 0.0
    %829 = vmatprep.subr.mxu0 0.0
    %830 = vmatpush1.msra.mxu0 0.0
    %831 = vmatprep.subr.mxu0 0.0
    %832 = vmatpush1.msra.mxu0 0.0
    %833 = vmatprep.subr.mxu0 0.0
    %834 = vmatpush1.msra.mxu0 0.0
    %835 = vmatprep.subr.mxu0 0.0
    %836 = vmatpush1.msra.mxu0 0.0
    %837 = vmatprep.subr.mxu0 0.0
    %838 = vmatpush1.msra.mxu0 0.0
    %839 = vmatprep.subr.mxu0 0.0
    %840 = vmatpush1.msra.mxu0 0.0
    %841 = vmatprep.subr.mxu0 0.0
    %842 = vmatpush1.msra.mxu0 0.0
    %843 = vmatprep.subr.mxu0 0.0
    %844 = vmatpush1.msra.mxu0 0.0
    %845 = vmatprep.subr.mxu0 0.0
    %846 = vmatpush1.msra.mxu0 0.0
    %847 = vmatprep.subr.mxu0 0.0
    %848 = vmatpush1.msra.mxu0 0.0
    %849 = vmatprep.subr.mxu0 0.0
    %850 = vmatpush1.msra.mxu0 0.0
    %851 = vmatprep.subr.mxu0 0.0
    %852 = vmatpush1.msra.mxu0 0.0
    %853 = vmatprep.subr.mxu0 0.0
    %854 = vmatpush1.msra.mxu0 0.0
    %855 = vmatprep.subr.mxu0 0.0
    %856 = vmatpush1.msra.mxu0 0.0
    %857 = vmatprep.subr.mxu0 0.0
    %858 = vmatpush1.msra.mxu0 0.0
    %859 = vmatprep.subr.mxu0 0.0
    %860 = vmatpush1.msra.mxu0 0.0
    %861 = vmatprep.subr.mxu0 0.0
    %862 = vmatpush1.msra.mxu0 0.0
    %863 = vmatprep.subr.mxu0 0.0
    %864 = vmatpush1.msra.mxu0 0.0
    %865 = vmatprep.subr.mxu0 0.0
    %866 = vmatpush1.msra.mxu0 0.0
    %867 = vmatprep.subr.mxu0 0.0
    %868 = vmatpush1.msra.mxu0 0.0
    %869 = vmatprep.subr.mxu0 0.0
    %870 = vmatpush1.msra.mxu0 0.0
    %871 = vmatprep.subr.mxu0 0.0
    %872 = vmatpush1.msra.mxu0 0.0
    %873 = vmatprep.subr.mxu0 0.0
    %874 = vmatpush1.msra.mxu0 0.0
    %875 = vmatprep.subr.mxu0 0.0
    %876 = vmatpush1.msra.mxu0 0.0
    %877 = vmatprep.mubr.f32.mxu0 0.0
    %878 = vmatmul.mubr.f32.gmra.mrb[0].mxu0 %v811
    %v879 = vpop.f32.mrb[0].mxu0
    %v880 = vadd.f32 0.0, %v879
    %v881 = vpop.f32.mrb[0].mxu0
    %882 = vdwg.mxu0
    %v883 = vrcp.pop %v807
    %v884 = vrcp.pop %v880
    %887 = vrot.lane.b32.xlu0 %v883, 124
    %v888 = vpop.permute.xlu0 %887
    %889 = vrot.lane.b32.xlu0 %v884, 124
    %v890 = vpop.permute.xlu0 %889
    %v893 = vmul.f32 %v807, %v888
    %v894 = vmul.f32 %v880, %v890
    %897 = vrot.lane.b32.xlu0 %v893, 4
    %v898 = vpop.permute.xlu0 %897
    %899 = vrot.lane.b32.xlu0 %v894, 4
    %v900 = vpop.permute.xlu0 %899
    %v903 = vsel %vm243, %v567, %v898
    %v904 = vsel %vm243, %v568, %v900
    %v905 = vld [vmem:[%s8] sm:$0xff]
    %v906 = vld [vmem:[%s9] sm:$0x1]
    %v908 = vlaneseq
    %v909 = vshrl.u32 %v908, 7
    %v910 = vsub.s32 0, %v909
    %v911 = vrot.slane %v906, %v910
    %v914 = vsel %vm246, %v903, 0
    %v917 = vsel %vm246, %v904, 0
    %919 = vmatprep.subr.mxu0 0.0
    %920 = vmatpush1.msra.mxu0 %v905
    %921 = vmatprep.subr.mxu0 0.0
    %922 = vmatpush1.msra.mxu0 0.0
    %923 = vmatprep.subr.mxu0 0.0
    %924 = vmatpush1.msra.mxu0 0.0
    %925 = vmatprep.subr.mxu0 0.0
    %926 = vmatpush1.msra.mxu0 0.0
    %927 = vmatprep.subr.mxu0 0.0
    %928 = vmatpush1.msra.mxu0 0.0
    %929 = vmatprep.subr.mxu0 0.0
    %930 = vmatpush1.msra.mxu0 0.0
    %931 = vmatprep.subr.mxu0 0.0
    %932 = vmatpush1.msra.mxu0 0.0
    %933 = vmatprep.subr.mxu0 0.0
    %934 = vmatpush1.msra.mxu0 0.0
    %935 = vmatprep.subr.mxu0 0.0
    %936 = vmatpush1.msra.mxu0 0.0
    %937 = vmatprep.subr.mxu0 0.0
    %938 = vmatpush1.msra.mxu0 0.0
    %939 = vmatprep.subr.mxu0 0.0
    %940 = vmatpush1.msra.mxu0 0.0
    %941 = vmatprep.subr.mxu0 0.0
    %942 = vmatpush1.msra.mxu0 0.0
    %943 = vmatprep.subr.mxu0 0.0
    %944 = vmatpush1.msra.mxu0 0.0
    %945 = vmatprep.subr.mxu0 0.0
    %946 = vmatpush1.msra.mxu0 0.0
    %947 = vmatprep.subr.mxu0 0.0
    %948 = vmatpush1.msra.mxu0 0.0
    %949 = vmatprep.subr.mxu0 0.0
    %950 = vmatpush1.msra.mxu0 0.0
    %951 = vmatprep.subr.mxu0 0.0
    %952 = vmatpush1.msra.mxu0 0.0
    %953 = vmatprep.subr.mxu0 0.0
    %954 = vmatpush1.msra.mxu0 0.0
    %955 = vmatprep.subr.mxu0 0.0
    %956 = vmatpush1.msra.mxu0 0.0
    %957 = vmatprep.subr.mxu0 0.0
    %958 = vmatpush1.msra.mxu0 0.0
    %959 = vmatprep.subr.mxu0 0.0
    %960 = vmatpush1.msra.mxu0 0.0
    %961 = vmatprep.subr.mxu0 0.0
    %962 = vmatpush1.msra.mxu0 0.0
    %963 = vmatprep.subr.mxu0 0.0
    %964 = vmatpush1.msra.mxu0 0.0
    %965 = vmatprep.subr.mxu0 0.0
    %966 = vmatpush1.msra.mxu0 0.0
    %967 = vmatprep.subr.mxu0 0.0
    %968 = vmatpush1.msra.mxu0 0.0
    %969 = vmatprep.subr.mxu0 0.0
    %970 = vmatpush1.msra.mxu0 0.0
    %971 = vmatprep.subr.mxu0 0.0
    %972 = vmatpush1.msra.mxu0 0.0
    %973 = vmatprep.subr.mxu0 0.0
    %974 = vmatpush1.msra.mxu0 0.0
    %975 = vmatprep.subr.mxu0 0.0
    %976 = vmatpush1.msra.mxu0 0.0
    %977 = vmatprep.subr.mxu0 0.0
    %978 = vmatpush1.msra.mxu0 0.0
    %979 = vmatprep.subr.mxu0 0.0
    %980 = vmatpush1.msra.mxu0 0.0
    %981 = vmatprep.subr.mxu0 0.0
    %982 = vmatpush1.msra.mxu0 0.0
    %983 = vmatprep.mubr.f32.mxu0 0.0
    %984 = vmatmul.mubr.f32.gmra.mrb[0].mxu0 %v914
    %v985 = vpop.f32.mrb[0].mxu0
    %v986 = vadd.f32 %v911, %v985
    %v987 = vpop.f32.mrb[0].mxu0
    %988 = vmatprep.mubr.f32.mxu0 0.0
    %989 = vmatmul.mubr.f32.gmra.mrb[0].mxu0 %v917
    %v990 = vpop.f32.mrb[0].mxu0
    %v991 = vadd.f32 %v911, %v990
    %v992 = vpop.f32.mrb[0].mxu0
    %993 = vdwg.mxu0
    %994 = vst.msk [vmem:[#allocation2] sm:$0xff] %vm49, %v986
    %995 = vst.msk [vmem:[#allocation2 + $0x8] sm:$0xff] %vm49, %v991
    // Predicated region
    $region42: #{tpu_custom_call.1} parent=1 // pred_check
      _
    $region43: #{tpu_custom_call.1} parent=1 // pred_check_branch
      %997 = sbr.rel (0) target = $region45
    $region44: #{tpu_custom_call.1} parent=1 // pred_region
      %s999 = ssub.s32 256, 256
      %1000 = vsyncadd [#allocation3], %s999
      %s1001 = sshll.u32 [#allocation2], 4
      %s1002 = int_to_ptr.vmem [resolvable:$true] %s1001
      %1007 = dma.vmem_to_hbm [thread:$0]  %s1002, 256, %s10, [#allocation3], 128, 128, 8
    $region45: #{tpu_custom_call.1} parent=1 // pred_fallthru
      _
    // Predicated region
    $region46: #{tpu_custom_call.1} parent=1 // pred_check
      _
    $region47: #{tpu_custom_call.1} parent=1 // pred_check_branch
      %1009 = sbr.rel (0) target = $region49
    $region48: #{tpu_custom_call.1} parent=1 // pred_region
      %1010 = dma.done [#allocation3], 256
    $region49: #{tpu_custom_call.1} parent=1 // pred_fallthru
      _
    %1011 = vsyncpa [#allocation3], 1

</llo_original>
